<compile_context>
chip_gen: v5e
topology: v5e:2x2
jax: 0.10.0
libtpu: 0.0.40
codegen_flags: <defaults>
</compile_context>

<pallas_src>
import jax
import jax.numpy as jnp
from jax.experimental import pallas as pl
from jax.experimental.pallas import tpu as pltpu


def fcn_affine_kernel(x_ref, w_ref, b_ref, o_ref):
    # x: (block_b, D); w: (1, D) fused W_eff row; b: (1, 1); o: (block_b, 1).
    x = x_ref[...].astype(jnp.float32)
    y = jnp.sum(x * w_ref[...], axis=-1, keepdims=True) + b_ref[...]
    o_ref[...] = y.astype(o_ref.dtype)


def fuse_fcn_params(w0, b0, w1, b1, w2, b2):
    """Collapse fc -> fc1 -> out (no activations) into one affine map.

    Weights are expected pre-transposed to (in, out) so y = x @ W + b.
    Returns (w_row, b_eff): w_row is (1, input_dim), b_eff is (1, 1), both f32.
    Run once per set of weights; amortized over all forward calls.
    """
    hi = jax.lax.Precision.HIGHEST
    f32 = jnp.float32
    w0, w1, w2 = w0.astype(f32), w1.astype(f32), w2.astype(f32)
    b0, b1, b2 = (jnp.asarray(b, f32).reshape(1, -1) for b in (b0, b1, b2))
    w_eff = jnp.dot(jnp.dot(w0, w1, precision=hi), w2, precision=hi)      # (D, 1)
    b_eff = (jnp.dot(jnp.dot(b0, w1, precision=hi), w2, precision=hi)
             + jnp.dot(b1, w2, precision=hi) + b2)                        # (1, 1)
    return w_eff.T, b_eff


def _round_up(n, m):
    return ((n + m - 1) // m) * m


def fcn_forward(x, w_row, b_eff, *, block_b=None):
    """y = x @ W_eff + b_eff  ==  ((x @ W0 + b0) @ W1 + b1) @ W2 + b2."""
    B, in_dim = x.shape
    assert w_row.shape == (1, in_dim)

    if block_b is None:
        if B <= 1024:
            # Single grid step: no per-step pipeline overhead for small B.
            block_b = max(16, _round_up(B, 16))
        else:
            # Large B: 128-multiple tile, preferably dividing B (no pad copy).
            block_b = next((t for t in (512, 384, 256, 128) if B % t == 0), 512)
    block_b = _round_up(max(16, min(block_b, _round_up(B, 16))), 16)

    pad = (-B) % block_b
    if pad:
        # Only taken when no dividing tile exists; tail rows are sliced off.
        x = jnp.pad(x, ((0, pad), (0, 0)))
    Bp = B + pad
    grid = (Bp // block_b,)

    # Fused weight/bias use constant index_maps -> fetched once, VMEM-resident.
    const = lambda a: pl.BlockSpec(a.shape, lambda i: (0,) * a.ndim)

    cost = pl.CostEstimate(
        flops=2 * Bp * in_dim,
        transcendentals=0,
        bytes_accessed=(x.size * x.dtype.itemsize
                        + w_row.size * 4 + b_eff.size * 4 + Bp * 4),
    )

    out = pl.pallas_call(
        fcn_affine_kernel,
        out_shape=jax.ShapeDtypeStruct((Bp, 1), jnp.float32),
        grid=grid,
        in_specs=[
            pl.BlockSpec((block_b, in_dim), lambda i: (i, 0)),  # x (streamed)
            const(w_row),                                       # fused W_eff
            const(b_eff),                                       # fused bias
        ],
        out_specs=pl.BlockSpec((block_b, 1), lambda i: (i, 0)),
        compiler_params=pltpu.CompilerParams(
            dimension_semantics=("parallel",),                  # megacore on v7x
        ),
        cost_estimate=cost,
    )(x, w_row, b_eff)

    return out[:B] if pad else out


def init_linear(key, in_dim, out_dim):
    # Deterministic init mimicking nn.Linear's uniform(-1/sqrt(in), 1/sqrt(in)).
    kw, kb = jax.random.split(key)
    bound = 1.0 / jnp.sqrt(jnp.float32(in_dim))
    w = jax.random.uniform(kw, (in_dim, out_dim), jnp.float32, -bound, bound)
    b = jax.random.uniform(kb, (1, out_dim), jnp.float32, -bound, bound)
    return w, b


if __name__ == "__main__":
    key = jax.random.PRNGKey(0)
    kx, k0, k1, k2 = jax.random.split(key, 4)

    batch = 16
    input_dim = 256
    output_dim = 1024  # must be 1024 so fc chains into fc1 (1024 -> 512)

    x = jax.random.normal(kx, (batch, input_dim), jnp.float32)
    w0, b0 = init_linear(k0, input_dim, output_dim)
    w1, b1 = init_linear(k1, 1024, 512)
    w2, b2 = init_linear(k2, 512, 1)

    # One-time fusion of the activation-free 3-Linear stack (outside kernel).
    w_row, b_eff = fuse_fcn_params(w0, b0, w1, b1, w2, b2)

    out = fcn_forward(x, w_row, b_eff)
    out = jax.block_until_ready(out)
    assert out.shape == (batch, 1)

    hi = jax.lax.Precision.HIGHEST

    # Reference 1: fused affine map in plain JAX (tight).
    ref_fused = jnp.dot(x, w_row.T, precision=hi) + b_eff
    assert jnp.allclose(out, ref_fused, atol=1e-4, rtol=1e-4)

    # Reference 2: the original 3-Linear f32 chain (the PyTorch forward).
    h0 = jnp.dot(x, w0, precision=hi) + b0
    h1 = jnp.dot(h0, w1, precision=hi) + b1
    ref_chain = jnp.dot(h1, w2, precision=hi) + b2
    assert jnp.allclose(out, ref_chain, atol=2e-3, rtol=2e-3)

    print("KERNEL_OK")
</pallas_src>

<mosaic_0001>
module attributes {stable_mosaic.version = 11 : i64} {
  func.func @fcn_affine_kernel(%arg0: i32, %arg1: memref<16x256xf32, #tpu.memory_space<vmem>>, %arg2: memref<1x256xf32, #tpu.memory_space<vmem>>, %arg3: memref<1x1xf32, #tpu.memory_space<vmem>>, %arg4: memref<16x1xf32, #tpu.memory_space<vmem>>) attributes {dimension_semantics = [#tpu.dimension_semantics<parallel>], iteration_bounds = array<i64: 1>, scalar_prefetch = 0 : i64, scratch_operands = 0 : i64, tpu.core_type = #tpu.core_type<tc>, window_params = [{transform_indices = @transform_0, window_bounds = array<i64: 16, 256>}, {pipeline_mode = #tpu.pipeline_mode<synchronous>, transform_indices = @transform_1, window_bounds = array<i64: 1, 256>}, {pipeline_mode = #tpu.pipeline_mode<synchronous>, transform_indices = @transform_2, window_bounds = array<i64: 1, 1>}, {transform_indices = @transform_3, window_bounds = array<i64: 16, 1>}]} {
    %c0 = arith.constant 0 : index
    %c0_0 = arith.constant 0 : index
    %0 = vector.load %arg1[%c0, %c0_0] : memref<16x256xf32, #tpu.memory_space<vmem>>, vector<16x256xf32>
    %c0_1 = arith.constant 0 : index
    %c0_2 = arith.constant 0 : index
    %1 = vector.load %arg2[%c0_1, %c0_2] : memref<1x256xf32, #tpu.memory_space<vmem>>, vector<1x256xf32>
    %2 = vector.broadcast %1 : vector<1x256xf32> to vector<16x256xf32>
    %3 = arith.mulf %0, %2 : vector<16x256xf32>
    %cst = arith.constant dense<0.000000e+00> : vector<16xf32>
    %4 = vector.multi_reduction <add>, %3, %cst [1] : vector<16x256xf32> to vector<16xf32>
    %5 = vector.shape_cast %4 : vector<16xf32> to vector<16x1xf32>
    %c0_3 = arith.constant 0 : index
    %c0_4 = arith.constant 0 : index
    %6 = vector.load %arg3[%c0_3, %c0_4] : memref<1x1xf32, #tpu.memory_space<vmem>>, vector<1x1xf32>
    %7 = vector.broadcast %6 : vector<1x1xf32> to vector<16x1xf32>
    %8 = arith.addf %5, %7 : vector<16x1xf32>
    %c0_5 = arith.constant 0 : index
    %c0_6 = arith.constant 0 : index
    %9 = vector.load %arg4[%c0_5, %c0_6] : memref<16x1xf32, #tpu.memory_space<vmem>>, vector<16x1xf32>
    tpu.vector_store %arg4[%c0_5, %c0_6], %8 {strides = array<i32>} : memref<16x1xf32, #tpu.memory_space<vmem>>, vector<16x1xf32>,
    return
  }
  func.func @transform_0(%arg0: i32) -> (i32, i32) {
    %c0_i32 = arith.constant 0 : i32
    %c0_i32_0 = arith.constant 0 : i32
    return %arg0, %c0_i32 : i32, i32
  }
  func.func @transform_1(%arg0: i32) -> (i32, i32) {
    %c0_i32 = arith.constant 0 : i32
    %c0_i32_0 = arith.constant 0 : i32
    %c0_i32_1 = arith.constant 0 : i32
    return %c0_i32, %c0_i32_0 : i32, i32
  }
  func.func @transform_2(%arg0: i32) -> (i32, i32) {
    %c0_i32 = arith.constant 0 : i32
    %c0_i32_0 = arith.constant 0 : i32
    %c0_i32_1 = arith.constant 0 : i32
    return %c0_i32, %c0_i32_0 : i32, i32
  }
  func.func @transform_3(%arg0: i32) -> (i32, i32) {
    %c0_i32 = arith.constant 0 : i32
    %c0_i32_0 = arith.constant 0 : i32
    return %arg0, %c0_i32 : i32, i32
  }
}

</mosaic_0001>

<llo_original>
// kernel: tpu_custom_call.1
$region0: #{tpu_custom_call.1}
  #allocation0 [shape = 'u32[]', space=smem, size = 0x4, offset = 0x4, fixed_abs, tag = 'smem constant byte address 0x4 - core index']
  #allocation1 [shape = 'u32[72,128]{1,0:T(1,128)}', space=vmem, size = 0x9000, scoped, tag = 'internal scratch']
  #allocation2 [shape = 'f32[1,1]{1,0:T(1,128)S(1)}', space=vmem, size = 0x200, scoped, tag = 'scoped memory for tpu_custom_call.1']
  %s0 = inlined_call_operand.hbm [shape: f32[16,256], index: 0, kind: input, shape index: {}]
  %s1 = inlined_call_operand.vmem [shape: f32[1,256], index: 1, kind: input, shape index: {}]
  %s2 = inlined_call_operand.<no memory space> [shape: f32[1,1], index: 2, kind: input, shape index: {}]
  %s3 = inlined_call_operand.vmem [shape: f32[16,1], index: 3, kind: output, shape index: {}]
  %s4 = sld [smem:[#allocation0]]
  $region26: #{tpu_custom_call.1} parent=0
    _
  %s6 = ssub.s32 1, %s4
  %s7 = scalar_select 0, %s6, %s4
  %v8 = vstv %s2
  %9 = vst [vmem:[#allocation2] sm:$0x1] %v8
  $region1: #{tpu_custom_call.1} parent=0
    #allocation3 [shape = 'u8[16384]{0}', space=vmem, size = 0x4000, scoped, tag = 'input window, operand 0, single buffered']
    #allocation4 [shape = 's32[1]{0}', space=sflag, size = 0x4, scoped, tag = 'scoped memory for tpu_custom_call.1']
    %10 = vsyncpa [#allocation4], 0
    // Predicated region
    $region2: #{tpu_custom_call.1} parent=1 // pred_check
      _
    $region3: #{tpu_custom_call.1} parent=1 // pred_check_branch
      %12 = sbr.rel (0) target = $region5
    $region4: #{tpu_custom_call.1} parent=1 // pred_region
      %14 = vsyncadd [#allocation4], 0
      %s15 = sshll.u32 %s0, 4
      %s16 = int_to_ptr.hbm [resolvable:$true] %s15
      %s17 = sshll.u32 [#allocation3], 4
      %s18 = int_to_ptr.vmem [resolvable:$true] %s17
      %23 = dma.hbm_to_vmem [thread:$0]  %s16, 512, %s18, [#allocation4], 256, 256, 16
    $region5: #{tpu_custom_call.1} parent=1 // pred_fallthru
      _
    // Predicated region
    $region6: #{tpu_custom_call.1} parent=1 // pred_check
      _
    $region7: #{tpu_custom_call.1} parent=1 // pred_check_branch
      %25 = sbr.rel (0) target = $region9
    $region8: #{tpu_custom_call.1} parent=1 // pred_region
      _
    $region9: #{tpu_custom_call.1} parent=1 // pred_fallthru
      _
    // Predicated region
    $region10: #{tpu_custom_call.1} parent=1 // pred_check
      _
    $region11: #{tpu_custom_call.1} parent=1 // pred_check_branch
      %27 = sbr.rel (0) target = $region13
    $region12: #{tpu_custom_call.1} parent=1 // pred_region
      _
    $region13: #{tpu_custom_call.1} parent=1 // pred_fallthru
      _
    // Predicated region
    $region14: #{tpu_custom_call.1} parent=1 // pred_check
      _
    $region15: #{tpu_custom_call.1} parent=1 // pred_check_branch
      %29 = sbr.rel (0) target = $region17
    $region16: #{tpu_custom_call.1} parent=1 // pred_region
      %31 = dma.done [#allocation4], 512
    $region17: #{tpu_custom_call.1} parent=1 // pred_fallthru
      _
    %v32 = vld [vmem:[#allocation3] sm:$0xff]
    %v33 = vld [vmem:[#allocation3 + $0x8] sm:$0xff]
    %v34 = vld [vmem:[#allocation3 + $0x10] sm:$0xff]
    %v35 = vld [vmem:[#allocation3 + $0x18] sm:$0xff]
    %v36 = vld [vmem:[%s1] sm:$0x3]
    %v38 = vperm.slane %v36, 0
    %v39 = vperm.slane %v36, 1
    %v42 = vmul.f32 %v32, %v38
    %v43 = vmul.f32 %v33, %v39
    %v44 = vmul.f32 %v34, %v38
    %v45 = vmul.f32 %v35, %v39
    %v46 = vadd.f32 %v42, %v43
    %47 = vadd.xlane.f32.xlu0 %v46
    %v48 = vpop.xlane.xlu0 %47
    %v49 = vadd.f32 %v44, %v45
    %50 = vadd.xlane.f32.xlu0 %v49
    %v51 = vpop.xlane.xlu0 %50
    %v52 = vld [vmem:[#allocation2] sm:$0x1]
    %v54 = vperm.slane %v52, 0
    %v56 = vadd.f32 %v48, %v54
    %v57 = vadd.f32 %v51, %v54
    %vm58 = vcmask 7168
    %59 = vst.msk [vmem:[%s3] sm:$0xff] %vm58, %v56
    %60 = vst.msk [vmem:[%s3 + $0x8] sm:$0xff] %vm58, %v57
    // Predicated region
    $region18: #{tpu_custom_call.1} parent=1 // pred_check
      _
    $region19: #{tpu_custom_call.1} parent=1 // pred_check_branch
      %62 = sbr.rel (0) target = $region21
    $region20: #{tpu_custom_call.1} parent=1 // pred_region
      _
    $region21: #{tpu_custom_call.1} parent=1 // pred_fallthru
      _
    // Predicated region
    $region22: #{tpu_custom_call.1} parent=1 // pred_check
      _
    $region23: #{tpu_custom_call.1} parent=1 // pred_check_branch
      %64 = sbr.rel (0) target = $region25
    $region24: #{tpu_custom_call.1} parent=1 // pred_region
      _
    $region25: #{tpu_custom_call.1} parent=1 // pred_fallthru
      _
    %65 = vsyncpa [#allocation4], 1

</llo_original>
